<compile_context>
chip_gen: v7x
topology: tpu7x:2x2x1
jax: 0.10.0
libtpu: 0.0.40
codegen_flags: <defaults>
</compile_context>

<pallas_src>
import jax
import jax.numpy as jnp
from jax.experimental import pallas as pl
from jax.experimental.pallas import tpu as pltpu

_LANES = 512                       # lane-dense last dim (multiple of 128)
_TILE_BYTES = 6 * 1024 * 1024      # ~6 MiB per-tile DMA target
_FAST_PATH_ELEMS = 64 * 1024       # below this, skip pallas_call entirely
_VMEM_LIMIT = 48 * 1024 * 1024


def _vdp_kernel(mu_ref, u_ref, o_ref):
    # Compute natively in bf16/f16 (v6e/v7x have 16-bit VPUs); otherwise f32.
    if u_ref.dtype in (jnp.bfloat16, jnp.float16):
        cdt = u_ref.dtype
    else:
        cdt = jnp.float32
    mu = mu_ref[0, 0].astype(cdt)            # scalar from SMEM
    u = u_ref[...].astype(cdt)
    o_ref[...] = (-mu * (1.0 - u * u)).astype(o_ref.dtype)


def _sublane(dtype):
    itemsize = jnp.dtype(dtype).itemsize
    return max(8, 32 // itemsize)            # 8 (f32), 16 (bf16/f16), 32 (8-bit)


def _round_up(x, m):
    return ((x + m - 1) // m) * m


def _pallas_rows(u2d, mu2d, tile_rows):
    rows, lanes = u2d.shape
    grid = (pl.cdiv(rows, tile_rows),)
    return pl.pallas_call(
        _vdp_kernel,
        out_shape=jax.ShapeDtypeStruct((rows, lanes), u2d.dtype),
        grid=grid,
        in_specs=[
            pl.BlockSpec(memory_space=pltpu.SMEM),                 # mu scalar
            pl.BlockSpec((tile_rows, lanes), lambda i: (i, 0)),    # U tiles
        ],
        out_specs=pl.BlockSpec((tile_rows, lanes), lambda i: (i, 0)),
        compiler_params=pltpu.CompilerParams(
            dimension_semantics=("parallel",),
            vmem_limit_bytes=_VMEM_LIMIT,
        ),
    )(mu2d, u2d)


def vdp_forward(u, mu):
    """Computes -mu * (1 - u**2) elementwise.

    u  : array of any shape / float dtype (output keeps the input dtype).
    mu : array of shape (1,) — the learnable parameter.
    """
    orig_shape = u.shape
    dtype = u.dtype
    n = u.size

    # Small-input fast path: a fused XLA elementwise op beats kernel launch.
    if n < _FAST_PATH_ELEMS:
        return (-mu[0] * (1.0 - u.astype(jnp.float32) ** 2)).astype(dtype)

    sub = _sublane(dtype)
    itemsize = jnp.dtype(dtype).itemsize
    max_tile_rows = max(sub, (_TILE_BYTES // (_LANES * itemsize)) // sub * sub)

    mu2d = mu.reshape(1, 1).astype(jnp.float32)
    flat = u.reshape(-1)

    rows_full = n // _LANES                  # >= 128 given the fast-path gate
    tail = n - rows_full * _LANES

    # Ensure >= 2 grid blocks (v7x megacore sharding), cap tile at ~6 MiB.
    half = _round_up(-(-rows_full // 2), sub)
    tile_rows = max(sub, min(max_tile_rows, half))

    bulk2d = flat[: rows_full * _LANES].reshape(rows_full, _LANES)
    bulk_out = _pallas_rows(bulk2d, mu2d, tile_rows)

    if tail == 0:
        return bulk_out.reshape(orig_shape)

    # Sub-row remainder (< 512 elems): handle in plain jnp, no whole-array pad.
    tail_in = flat[rows_full * _LANES:]
    tail_out = (-mu[0] * (1.0 - tail_in.astype(jnp.float32) ** 2)).astype(dtype)
    return jnp.concatenate([bulk_out.reshape(-1), tail_out]).reshape(orig_shape)


if __name__ == "__main__":
    key = jax.random.PRNGKey(0)

    # Parameter: matches nn.Parameter(torch.ones(1)).
    mu = jnp.ones((1,), dtype=jnp.float32)

    # Module-scale NCHW input (2*4*16*16 = 2048 elems) -> fast path.
    x_small = jax.random.normal(key, (2, 4, 16, 16), dtype=jnp.float32)
    out_small = jax.block_until_ready(vdp_forward(x_small, mu))
    ref_small = -mu[0] * (1.0 - x_small ** 2)
    assert out_small.shape == x_small.shape and out_small.dtype == x_small.dtype
    assert jnp.allclose(out_small, ref_small, atol=1e-6, rtol=1e-6)

    # Larger input exercising the Pallas streaming path (lane-multiple size).
    k1, k2 = jax.random.split(key)
    x_big = jax.random.normal(k1, (2, 4, 128, 128), dtype=jnp.float32)  # 131072 elems
    out_big = jax.block_until_ready(vdp_forward(x_big, mu))
    ref_big = -mu[0] * (1.0 - x_big ** 2)
    assert out_big.shape == x_big.shape and out_big.dtype == x_big.dtype
    assert jnp.allclose(out_big, ref_big, atol=1e-6, rtol=1e-6)

    # Non-multiple-of-512 element count exercising the bulk + tail path.
    x_tail = jax.random.normal(k2, (70000,), dtype=jnp.float32)
    out_tail = jax.block_until_ready(vdp_forward(x_tail, mu))
    ref_tail = -mu[0] * (1.0 - x_tail ** 2)
    assert out_tail.shape == x_tail.shape and out_tail.dtype == x_tail.dtype
    assert jnp.allclose(out_tail, ref_tail, atol=1e-6, rtol=1e-6)

    print("KERNEL_OK")
</pallas_src>

<mosaic_0001>
module attributes {stable_mosaic.version = 11 : i64} {
  func.func @_vdp_kernel(%arg0: i32, %arg1: memref<1x1xf32, #tpu.memory_space<smem>>, %arg2: memref<128x512xf32, #tpu.memory_space<vmem>>, %arg3: memref<128x512xf32, #tpu.memory_space<vmem>>) attributes {dimension_semantics = [#tpu.dimension_semantics<parallel>], iteration_bounds = array<i64: 2>, scalar_prefetch = 0 : i64, scratch_operands = 0 : i64, tpu.core_type = #tpu.core_type<tc>, window_params = [{transform_indices = @transform_0, window_bounds = array<i64: 1, 1>}, {transform_indices = @transform_1, window_bounds = array<i64: 128, 512>}, {transform_indices = @transform_2, window_bounds = array<i64: 128, 512>}]} {
    %c0 = arith.constant 0 : index
    %c0_0 = arith.constant 0 : index
    %0 = memref.load %arg1[%c0, %c0_0] : memref<1x1xf32, #tpu.memory_space<smem>>
    %c0_1 = arith.constant 0 : index
    %c0_2 = arith.constant 0 : index
    %1 = vector.load %arg2[%c0_1, %c0_2] : memref<128x512xf32, #tpu.memory_space<vmem>>, vector<128x512xf32>
    %cst = arith.constant 0.000000e+00 : f32
    %2 = arith.subf %cst, %0 : f32
    %3 = arith.mulf %1, %1 : vector<128x512xf32>
    %cst_3 = arith.constant 1.000000e+00 : f32
    %4 = vector.broadcast %cst_3 : f32 to vector<128x512xf32>
    %5 = arith.subf %4, %3 : vector<128x512xf32>
    %6 = vector.broadcast %2 : f32 to vector<128x512xf32>
    %7 = arith.mulf %6, %5 : vector<128x512xf32>
    %c0_4 = arith.constant 0 : index
    %c0_5 = arith.constant 0 : index
    %8 = vector.load %arg3[%c0_4, %c0_5] : memref<128x512xf32, #tpu.memory_space<vmem>>, vector<128x512xf32>
    tpu.vector_store %arg3[%c0_4, %c0_5], %7 {strides = array<i32>} : memref<128x512xf32, #tpu.memory_space<vmem>>, vector<128x512xf32>,
    return
  }
  func.func @transform_0(%arg0: i32) -> (i32, i32) {
    %c0_i32 = arith.constant 0 : i32
    %c0_i32_0 = arith.constant 0 : i32
    %c0_i32_1 = arith.constant 0 : i32
    return %c0_i32, %c0_i32_0 : i32, i32
  }
  func.func @transform_1(%arg0: i32) -> (i32, i32) {
    %c0_i32 = arith.constant 0 : i32
    %c0_i32_0 = arith.constant 0 : i32
    return %arg0, %c0_i32 : i32, i32
  }
  func.func @transform_2(%arg0: i32) -> (i32, i32) {
    %c0_i32 = arith.constant 0 : i32
    %c0_i32_0 = arith.constant 0 : i32
    return %arg0, %c0_i32 : i32, i32
  }
}

</mosaic_0001>

<llo_original>
// kernel: tpu_custom_call.1
$region0: #{tpu_custom_call.1}
  #allocation0 [shape = 'u32[]', space=smem, size = 0x4, offset = 0x4, fixed_abs, tag = 'smem constant byte address 0x4 - core index']
  #allocation1 [shape = 'u32[144,128]{1,0:T(1,128)}', space=vmem, size = 0x12000, scoped, tag = 'internal scratch']
  #allocation2 [shape = 'f32[1,1]{1,0:T(1,128)S(6)}', space=smem, size = 0x200, scoped, tag = 'scoped memory for tpu_custom_call.1']
  %s0 = inlined_call_operand.<no memory space> [shape: f32[1,1], index: 0, kind: input, shape index: {}]
  %s1 = inlined_call_operand.hbm [shape: f32[256,512], index: 1, kind: input, shape index: {}]
  %s2 = inlined_call_operand.hbm [shape: f32[256,512], index: 2, kind: output, shape index: {}]
  %s3 = sld [smem:[#allocation0]]
  $region45: #{tpu_custom_call.1} parent=0
    _
  %s5 = ssub.s32 1, %s3
  %s6 = scalar_select 0, %s5, %s3
  %7 = sst [smem:[#allocation2]] %s0
  $region1: #{tpu_custom_call.1} parent=0
    #allocation3 [shape = 'u8[524288]{0}', space=vmem, size = 0x80000, scoped, tag = 'input window, operand 1']
    #allocation4 [shape = 's32[2]{0}', space=sflag, size = 0x8, scoped, tag = 'scoped memory for tpu_custom_call.1']
    #allocation5 [shape = 's32[2]{0}', space=sflag, size = 0x8, scoped, tag = 'scoped memory for tpu_custom_call.1']
    #allocation6 [shape = 'u8[524288]{0}', space=vmem, size = 0x80000, scoped, tag = 'output window, operand 0']
    %8 = vsyncpa [#allocation4], 0
    %s9 = scalar_lea.sflag [#allocation4], 1
    %10 = vsyncpa %s9, 0
    %11 = vsyncpa [#allocation5], 0
    %s12 = scalar_lea.sflag [#allocation5], 1
    %13 = vsyncpa %s12, 0
    loop: start=0, step=1, limit=4
    $region2: #{tpu_custom_call.1} parent=1 // loop_pre_header
      _
    $region3: #{tpu_custom_call.1} parent=1 // loop_header
      %s15 = sphi 0, %s19
      %p16 = scmp.ge.s32.totalorder %s15, 4
      %s23 = sphi 0, %s23
      %s25 = sphi 0, %s23
      %s26 = sphi 0, %s25
      %s40 = sphi 0, %s26
      %s46 = sphi 0, %s48
      %s49 = sphi 0, %s46
      %s50 = sphi 0, %s49
      %s66 = sphi 0, %s50
      %s72 = sphi 0, %s74
      %s75 = sphi 0, %s72
      %s76 = sphi 0, %s75
      %s92 = sphi 0, %s76
    $region4: #{tpu_custom_call.1} parent=1 // loop_header_branch
      %18 = sbr.rel (%p16) target = $region8
    $region5: #{tpu_custom_call.1} parent=1 // loop_body
      %s20 = ssub.s32 %s15, 1
      %s21 = ssub.s32 %s15, 2
      %s22 = sadd.s32 %s15, 1
      %s24 = sadd.s32 %s23, 1
      %p27 = scmp.eq.s32.totalorder %s15, 1
      %p28 = scmp.ne.s32.totalorder %s23, %s25
      %p29 = scmp.eq.s32.totalorder %s15, 0
      %p30 = por %p28, %p29
      %p31 = scmp.ne.s32.totalorder %s23, %s25
      %p32 = scmp.eq.s32.totalorder %s20, 1
      %p33 = por %p31, %p32
      %p34 = scmp.ne.s32.totalorder %s25, %s26
      %p35 = scmp.eq.s32.totalorder %s20, 0
      %p36 = por %p34, %p35
      %p37 = scmp.ne.s32.totalorder %s25, %s26
      %p38 = scmp.eq.s32.totalorder %s21, 1
      %p39 = por %p37, %p38
      %p41 = scmp.ne.s32.totalorder %s26, %s40
      %p42 = scmp.eq.s32.totalorder %s21, 0
      %p43 = por %p41, %p42
      %s44 = ssub.s32 %s15, %s22
      %p45 = scmp.eq.s32.totalorder %s44, 0
      %s47 = sadd.s32 %s46, 1
      %s48 = scalar_select %p45, %s46, %s47
      %p51 = pneg %p45
      %p52 = scmp.eq.s32.totalorder %s15, 1
      %p53 = por %p51, %p52
      %p54 = scmp.ne.s32.totalorder %s46, %s49
      %p55 = scmp.eq.s32.totalorder %s15, 0
      %p56 = por %p54, %p55
      %p57 = scmp.ne.s32.totalorder %s46, %s49
      %p58 = scmp.eq.s32.totalorder %s20, 1
      %p59 = por %p57, %p58
      %p60 = scmp.ne.s32.totalorder %s49, %s50
      %p61 = scmp.eq.s32.totalorder %s20, 0
      %p62 = por %p60, %p61
      %p63 = scmp.ne.s32.totalorder %s49, %s50
      %p64 = scmp.eq.s32.totalorder %s21, 1
      %p65 = por %p63, %p64
      %p67 = scmp.ne.s32.totalorder %s50, %s66
      %p68 = scmp.eq.s32.totalorder %s21, 0
      %p69 = por %p67, %p68
      %s70 = ssub.s32 %s15, %s22
      %p71 = scmp.eq.s32.totalorder %s70, 0
      %s73 = sadd.s32 %s72, 1
      %s74 = scalar_select %p71, %s72, %s73
      %p77 = pneg %p71
      %p78 = scmp.eq.s32.totalorder %s15, 1
      %p79 = por %p77, %p78
      %p80 = scmp.ne.s32.totalorder %s72, %s75
      %p81 = scmp.eq.s32.totalorder %s15, 0
      %p82 = por %p80, %p81
      %p83 = scmp.ne.s32.totalorder %s72, %s75
      %p84 = scmp.eq.s32.totalorder %s20, 1
      %p85 = por %p83, %p84
      %p86 = scmp.ne.s32.totalorder %s75, %s76
      %p87 = scmp.eq.s32.totalorder %s20, 0
      %p88 = por %p86, %p87
      %p89 = scmp.ne.s32.totalorder %s75, %s76
      %p90 = scmp.eq.s32.totalorder %s21, 1
      %p91 = por %p89, %p90
      %p93 = scmp.ne.s32.totalorder %s76, %s92
      %p94 = scmp.eq.s32.totalorder %s21, 0
      %p95 = por %p93, %p94
      %p96 = scmp.le.s32.totalorder 1, %s15
      %p97 = scmp.lt.s32.totalorder %s15, 3
      %p98 = pnand %p96, %p97
      %p99 = pneg %p98
      // Predicated region
      $region9: #{tpu_custom_call.1} parent=5 // pred_check
        _
      $region10: #{tpu_custom_call.1} parent=5 // pred_check_branch
        %101 = sbr.rel (%p98) target = $region12
      $region11: #{tpu_custom_call.1} parent=5 // pred_region
        %s102 = ssub.s32 %s15, 1
        // Predicated region
        $region13: #{tpu_custom_call.1} parent=11 // pred_check
          %p103 = pneg %p36
        $region14: #{tpu_custom_call.1} parent=11 // pred_check_branch
          %105 = sbr.rel (%p103) target = $region16
        $region15: #{tpu_custom_call.1} parent=11 // pred_region
          _
        $region16: #{tpu_custom_call.1} parent=11 // pred_fallthru
          _
      $region12: #{tpu_custom_call.1} parent=5 // pred_fallthru
        _
      %p106 = scmp.lt.s32.totalorder %s15, 2
      // Predicated region
      $region17: #{tpu_custom_call.1} parent=5 // pred_check
        %p107 = pneg %p106
      $region18: #{tpu_custom_call.1} parent=5 // pred_check_branch
        %109 = sbr.rel (%p107) target = $region20
      $region19: #{tpu_custom_call.1} parent=5 // pred_region
        // Predicated region
        $region21: #{tpu_custom_call.1} parent=19 // pred_check
          %p110 = pneg %p56
        $region22: #{tpu_custom_call.1} parent=19 // pred_check_branch
          %112 = sbr.rel (%p110) target = $region24
        $region23: #{tpu_custom_call.1} parent=19 // pred_region
          %s113 = sand.u32 %s46, 1
          %s114 = scalar_lea.sflag [#allocation4], %s113
          %s115 = sand.u32 %s46, 1
          %s116 = smul.addr %s115, 512
          %s117 = scalar_lea.vmem [#allocation3], %s116
          %s118 = smul.u32 16, %s15
          %s120 = ssub.s32 8192, 8192
          %121 = vsyncadd %s114, %s120
          %s122 = smul.addr %s118, 4
          %s123 = smul.addr %s122, 128
          %s124 = scalar_lea.hbm %s1, %s123
          %s125 = sshll.u32 %s117, 4
          %s126 = int_to_ptr.vmem [resolvable:$true] %s125
          %131 = dma.hbm_to_vmem [thread:$0]  %s124, 8192, %s126, %s114, 512, 512, 32
        $region24: #{tpu_custom_call.1} parent=19 // pred_fallthru
          _
      $region20: #{tpu_custom_call.1} parent=5 // pred_fallthru
        _
      %p132 = scmp.le.s32.totalorder 1, %s15
      %p133 = scmp.lt.s32.totalorder %s15, 3
      %p134 = pnand %p132, %p133
      %p135 = pneg %p134
      // Predicated region
      $region25: #{tpu_custom_call.1} parent=5 // pred_check
        _
      $region26: #{tpu_custom_call.1} parent=5 // pred_check_branch
        %137 = sbr.rel (%p134) target = $region28
      $region27: #{tpu_custom_call.1} parent=5 // pred_region
        %s138 = ssub.s32 %s15, 1
        %s139 = sand.u32 %s49, 1
        %s140 = scalar_lea.sflag [#allocation4], %s139
        %s141 = sand.u32 %s49, 1
        %s142 = smul.addr %s141, 512
        %s143 = scalar_lea.vmem [#allocation3], %s142
        // Predicated region
        $region29: #{tpu_custom_call.1} parent=27 // pred_check
          %p144 = pneg %p62
        $region30: #{tpu_custom_call.1} parent=27 // pred_check_branch
          %146 = sbr.rel (%p144) target = $region32
        $region31: #{tpu_custom_call.1} parent=27 // pred_region
          %147 = dma.done %s140, 8192
        $region32: #{tpu_custom_call.1} parent=27 // pred_fallthru
          _
        %p148 = pneg %p36
        %p149 = pneg %p33
        %s150 = sand.u32 %s49, 1
        %s151 = scalar_lea.sflag [#allocation4], %s150
        %s152 = sand.u32 %s49, 1
        %s153 = smul.addr %s152, 512
        %s154 = scalar_lea.vmem [#allocation3], %s153
        %p155 = pneg %p62
        %p156 = pneg %p59
        %p157 = pneg %p88
        %p158 = pneg %p85
        %s159 = sand.u32 %s75, 1
        %s160 = scalar_lea.sflag [#allocation5], %s159
        %s161 = sand.u32 %s75, 1
        %s162 = smul.addr %s161, 512
        %s163 = scalar_lea.vmem [#allocation6], %s162
        %s164 = smul.u32 16, %s20
        %s165 = smul.u32 16, %s20
        %s166 = sld [smem:[#allocation2]]
        %v167 = vld [vmem:[%s143] sm:$0xff]
        %v168 = vld [vmem:[%s143 + $0x8] sm:$0xff]
        %v169 = vld [vmem:[%s143 + $0x10] sm:$0xff]
        %v170 = vld [vmem:[%s143 + $0x18] sm:$0xff]
        %v171 = vld [vmem:[%s143 + $0x20] sm:$0xff]
        %v172 = vld [vmem:[%s143 + $0x28] sm:$0xff]
        %v173 = vld [vmem:[%s143 + $0x30] sm:$0xff]
        %v174 = vld [vmem:[%s143 + $0x38] sm:$0xff]
        %v175 = vld [vmem:[%s143 + $0x40] sm:$0xff]
        %v176 = vld [vmem:[%s143 + $0x48] sm:$0xff]
        %v177 = vld [vmem:[%s143 + $0x50] sm:$0xff]
        %v178 = vld [vmem:[%s143 + $0x58] sm:$0xff]
        %v179 = vld [vmem:[%s143 + $0x60] sm:$0xff]
        %v180 = vld [vmem:[%s143 + $0x68] sm:$0xff]
        %v181 = vld [vmem:[%s143 + $0x70] sm:$0xff]
        %v182 = vld [vmem:[%s143 + $0x78] sm:$0xff]
        %v183 = vld [vmem:[%s143 + $0x80] sm:$0xff]
        %v184 = vld [vmem:[%s143 + $0x88] sm:$0xff]
        %v185 = vld [vmem:[%s143 + $0x90] sm:$0xff]
        %v186 = vld [vmem:[%s143 + $0x98] sm:$0xff]
        %v187 = vld [vmem:[%s143 + $0xa0] sm:$0xff]
        %v188 = vld [vmem:[%s143 + $0xa8] sm:$0xff]
        %v189 = vld [vmem:[%s143 + $0xb0] sm:$0xff]
        %v190 = vld [vmem:[%s143 + $0xb8] sm:$0xff]
        %v191 = vld [vmem:[%s143 + $0xc0] sm:$0xff]
        %v192 = vld [vmem:[%s143 + $0xc8] sm:$0xff]
        %v193 = vld [vmem:[%s143 + $0xd0] sm:$0xff]
        %v194 = vld [vmem:[%s143 + $0xd8] sm:$0xff]
        %v195 = vld [vmem:[%s143 + $0xe0] sm:$0xff]
        %v196 = vld [vmem:[%s143 + $0xe8] sm:$0xff]
        %v197 = vld [vmem:[%s143 + $0xf0] sm:$0xff]
        %v198 = vld [vmem:[%s143 + $0xf8] sm:$0xff]
        %v199 = vld [vmem:[%s143 + $0x100] sm:$0xff]
        %v200 = vld [vmem:[%s143 + $0x108] sm:$0xff]
        %v201 = vld [vmem:[%s143 + $0x110] sm:$0xff]
        %v202 = vld [vmem:[%s143 + $0x118] sm:$0xff]
        %v203 = vld [vmem:[%s143 + $0x120] sm:$0xff]
        %v204 = vld [vmem:[%s143 + $0x128] sm:$0xff]
        %v205 = vld [vmem:[%s143 + $0x130] sm:$0xff]
        %v206 = vld [vmem:[%s143 + $0x138] sm:$0xff]
        %v207 = vld [vmem:[%s143 + $0x140] sm:$0xff]
        %v208 = vld [vmem:[%s143 + $0x148] sm:$0xff]
        %v209 = vld [vmem:[%s143 + $0x150] sm:$0xff]
        %v210 = vld [vmem:[%s143 + $0x158] sm:$0xff]
        %v211 = vld [vmem:[%s143 + $0x160] sm:$0xff]
        %v212 = vld [vmem:[%s143 + $0x168] sm:$0xff]
        %v213 = vld [vmem:[%s143 + $0x170] sm:$0xff]
        %v214 = vld [vmem:[%s143 + $0x178] sm:$0xff]
        %v215 = vld [vmem:[%s143 + $0x180] sm:$0xff]
        %v216 = vld [vmem:[%s143 + $0x188] sm:$0xff]
        %v217 = vld [vmem:[%s143 + $0x190] sm:$0xff]
        %v218 = vld [vmem:[%s143 + $0x198] sm:$0xff]
        %v219 = vld [vmem:[%s143 + $0x1a0] sm:$0xff]
        %v220 = vld [vmem:[%s143 + $0x1a8] sm:$0xff]
        %v221 = vld [vmem:[%s143 + $0x1b0] sm:$0xff]
        %v222 = vld [vmem:[%s143 + $0x1b8] sm:$0xff]
        %v223 = vld [vmem:[%s143 + $0x1c0] sm:$0xff]
        %v224 = vld [vmem:[%s143 + $0x1c8] sm:$0xff]
        %v225 = vld [vmem:[%s143 + $0x1d0] sm:$0xff]
        %v226 = vld [vmem:[%s143 + $0x1d8] sm:$0xff]
        %v227 = vld [vmem:[%s143 + $0x1e0] sm:$0xff]
        %v228 = vld [vmem:[%s143 + $0x1e8] sm:$0xff]
        %v229 = vld [vmem:[%s143 + $0x1f0] sm:$0xff]
        %v230 = vld [vmem:[%s143 + $0x1f8] sm:$0xff]
        %s231 = ssub.f32 0.0, %s166
        %v232 = vmul.f32 %v167, %v167
        %v233 = vmul.f32 %v168, %v168
        %v234 = vmul.f32 %v169, %v169
        %v235 = vmul.f32 %v170, %v170
        %v236 = vmul.f32 %v171, %v171
        %v237 = vmul.f32 %v172, %v172
        %v238 = vmul.f32 %v173, %v173
        %v239 = vmul.f32 %v174, %v174
        %v240 = vmul.f32 %v175, %v175
        %v241 = vmul.f32 %v176, %v176
        %v242 = vmul.f32 %v177, %v177
        %v243 = vmul.f32 %v178, %v178
        %v244 = vmul.f32 %v179, %v179
        %v245 = vmul.f32 %v180, %v180
        %v246 = vmul.f32 %v181, %v181
        %v247 = vmul.f32 %v182, %v182
        %v248 = vmul.f32 %v183, %v183
        %v249 = vmul.f32 %v184, %v184
        %v250 = vmul.f32 %v185, %v185
        %v251 = vmul.f32 %v186, %v186
        %v252 = vmul.f32 %v187, %v187
        %v253 = vmul.f32 %v188, %v188
        %v254 = vmul.f32 %v189, %v189
        %v255 = vmul.f32 %v190, %v190
        %v256 = vmul.f32 %v191, %v191
        %v257 = vmul.f32 %v192, %v192
        %v258 = vmul.f32 %v193, %v193
        %v259 = vmul.f32 %v194, %v194
        %v260 = vmul.f32 %v195, %v195
        %v261 = vmul.f32 %v196, %v196
        %v262 = vmul.f32 %v197, %v197
        %v263 = vmul.f32 %v198, %v198
        %v264 = vmul.f32 %v199, %v199
        %v265 = vmul.f32 %v200, %v200
        %v266 = vmul.f32 %v201, %v201
        %v267 = vmul.f32 %v202, %v202
        %v268 = vmul.f32 %v203, %v203
        %v269 = vmul.f32 %v204, %v204
        %v270 = vmul.f32 %v205, %v205
        %v271 = vmul.f32 %v206, %v206
        %v272 = vmul.f32 %v207, %v207
        %v273 = vmul.f32 %v208, %v208
        %v274 = vmul.f32 %v209, %v209
        %v275 = vmul.f32 %v210, %v210
        %v276 = vmul.f32 %v211, %v211
        %v277 = vmul.f32 %v212, %v212
        %v278 = vmul.f32 %v213, %v213
        %v279 = vmul.f32 %v214, %v214
        %v280 = vmul.f32 %v215, %v215
        %v281 = vmul.f32 %v216, %v216
        %v282 = vmul.f32 %v217, %v217
        %v283 = vmul.f32 %v218, %v218
        %v284 = vmul.f32 %v219, %v219
        %v285 = vmul.f32 %v220, %v220
        %v286 = vmul.f32 %v221, %v221
        %v287 = vmul.f32 %v222, %v222
        %v288 = vmul.f32 %v223, %v223
        %v289 = vmul.f32 %v224, %v224
        %v290 = vmul.f32 %v225, %v225
        %v291 = vmul.f32 %v226, %v226
        %v292 = vmul.f32 %v227, %v227
        %v293 = vmul.f32 %v228, %v228
        %v294 = vmul.f32 %v229, %v229
        %v295 = vmul.f32 %v230, %v230
        %v296 = vsub.f32 1.0, %v232
        %v297 = vsub.f32 1.0, %v233
        %v298 = vsub.f32 1.0, %v234
        %v299 = vsub.f32 1.0, %v235
        %v300 = vsub.f32 1.0, %v236
        %v301 = vsub.f32 1.0, %v237
        %v302 = vsub.f32 1.0, %v238
        %v303 = vsub.f32 1.0, %v239
        %v304 = vsub.f32 1.0, %v240
        %v305 = vsub.f32 1.0, %v241
        %v306 = vsub.f32 1.0, %v242
        %v307 = vsub.f32 1.0, %v243
        %v308 = vsub.f32 1.0, %v244
        %v309 = vsub.f32 1.0, %v245
        %v310 = vsub.f32 1.0, %v246
        %v311 = vsub.f32 1.0, %v247
        %v312 = vsub.f32 1.0, %v248
        %v313 = vsub.f32 1.0, %v249
        %v314 = vsub.f32 1.0, %v250
        %v315 = vsub.f32 1.0, %v251
        %v316 = vsub.f32 1.0, %v252
        %v317 = vsub.f32 1.0, %v253
        %v318 = vsub.f32 1.0, %v254
        %v319 = vsub.f32 1.0, %v255
        %v320 = vsub.f32 1.0, %v256
        %v321 = vsub.f32 1.0, %v257
        %v322 = vsub.f32 1.0, %v258
        %v323 = vsub.f32 1.0, %v259
        %v324 = vsub.f32 1.0, %v260
        %v325 = vsub.f32 1.0, %v261
        %v326 = vsub.f32 1.0, %v262
        %v327 = vsub.f32 1.0, %v263
        %v328 = vsub.f32 1.0, %v264
        %v329 = vsub.f32 1.0, %v265
        %v330 = vsub.f32 1.0, %v266
        %v331 = vsub.f32 1.0, %v267
        %v332 = vsub.f32 1.0, %v268
        %v333 = vsub.f32 1.0, %v269
        %v334 = vsub.f32 1.0, %v270
        %v335 = vsub.f32 1.0, %v271
        %v336 = vsub.f32 1.0, %v272
        %v337 = vsub.f32 1.0, %v273
        %v338 = vsub.f32 1.0, %v274
        %v339 = vsub.f32 1.0, %v275
        %v340 = vsub.f32 1.0, %v276
        %v341 = vsub.f32 1.0, %v277
        %v342 = vsub.f32 1.0, %v278
        %v343 = vsub.f32 1.0, %v279
        %v344 = vsub.f32 1.0, %v280
        %v345 = vsub.f32 1.0, %v281
        %v346 = vsub.f32 1.0, %v282
        %v347 = vsub.f32 1.0, %v283
        %v348 = vsub.f32 1.0, %v284
        %v349 = vsub.f32 1.0, %v285
        %v350 = vsub.f32 1.0, %v286
        %v351 = vsub.f32 1.0, %v287
        %v352 = vsub.f32 1.0, %v288
        %v353 = vsub.f32 1.0, %v289
        %v354 = vsub.f32 1.0, %v290
        %v355 = vsub.f32 1.0, %v291
        %v356 = vsub.f32 1.0, %v292
        %v357 = vsub.f32 1.0, %v293
        %v358 = vsub.f32 1.0, %v294
        %v359 = vsub.f32 1.0, %v295
        %v360 = vstv %s231
        %v361 = vmul.f32 %v360, %v296
        %v362 = vmul.f32 %v360, %v297
        %v363 = vmul.f32 %v360, %v298
        %v364 = vmul.f32 %v360, %v299
        %v365 = vmul.f32 %v360, %v300
        %v366 = vmul.f32 %v360, %v301
        %v367 = vmul.f32 %v360, %v302
        %v368 = vmul.f32 %v360, %v303
        %v369 = vmul.f32 %v360, %v304
        %v370 = vmul.f32 %v360, %v305
        %v371 = vmul.f32 %v360, %v306
        %v372 = vmul.f32 %v360, %v307
        %v373 = vmul.f32 %v360, %v308
        %v374 = vmul.f32 %v360, %v309
        %v375 = vmul.f32 %v360, %v310
        %v376 = vmul.f32 %v360, %v311
        %v377 = vmul.f32 %v360, %v312
        %v378 = vmul.f32 %v360, %v313
        %v379 = vmul.f32 %v360, %v314
        %v380 = vmul.f32 %v360, %v315
        %v381 = vmul.f32 %v360, %v316
        %v382 = vmul.f32 %v360, %v317
        %v383 = vmul.f32 %v360, %v318
        %v384 = vmul.f32 %v360, %v319
        %v385 = vmul.f32 %v360, %v320
        %v386 = vmul.f32 %v360, %v321
        %v387 = vmul.f32 %v360, %v322
        %v388 = vmul.f32 %v360, %v323
        %v389 = vmul.f32 %v360, %v324
        %v390 = vmul.f32 %v360, %v325
        %v391 = vmul.f32 %v360, %v326
        %v392 = vmul.f32 %v360, %v327
        %v393 = vmul.f32 %v360, %v328
        %v394 = vmul.f32 %v360, %v329
        %v395 = vmul.f32 %v360, %v330
        %v396 = vmul.f32 %v360, %v331
        %v397 = vmul.f32 %v360, %v332
        %v398 = vmul.f32 %v360, %v333
        %v399 = vmul.f32 %v360, %v334
        %v400 = vmul.f32 %v360, %v335
        %v401 = vmul.f32 %v360, %v336
        %v402 = vmul.f32 %v360, %v337
        %v403 = vmul.f32 %v360, %v338
        %v404 = vmul.f32 %v360, %v339
        %v405 = vmul.f32 %v360, %v340
        %v406 = vmul.f32 %v360, %v341
        %v407 = vmul.f32 %v360, %v342
        %v408 = vmul.f32 %v360, %v343
        %v409 = vmul.f32 %v360, %v344
        %v410 = vmul.f32 %v360, %v345
        %v411 = vmul.f32 %v360, %v346
        %v412 = vmul.f32 %v360, %v347
        %v413 = vmul.f32 %v360, %v348
        %v414 = vmul.f32 %v360, %v349
        %v415 = vmul.f32 %v360, %v350
        %v416 = vmul.f32 %v360, %v351
        %v417 = vmul.f32 %v360, %v352
        %v418 = vmul.f32 %v360, %v353
        %v419 = vmul.f32 %v360, %v354
        %v420 = vmul.f32 %v360, %v355
        %v421 = vmul.f32 %v360, %v356
        %v422 = vmul.f32 %v360, %v357
        %v423 = vmul.f32 %v360, %v358
        %v424 = vmul.f32 %v360, %v359
        %425 = vst [vmem:[%s163] sm:$0xff] %v361
        %426 = vst [vmem:[%s163 + $0x8] sm:$0xff] %v362
        %427 = vst [vmem:[%s163 + $0x10] sm:$0xff] %v363
        %428 = vst [vmem:[%s163 + $0x18] sm:$0xff] %v364
        %429 = vst [vmem:[%s163 + $0x20] sm:$0xff] %v365
        %430 = vst [vmem:[%s163 + $0x28] sm:$0xff] %v366
        %431 = vst [vmem:[%s163 + $0x30] sm:$0xff] %v367
        %432 = vst [vmem:[%s163 + $0x38] sm:$0xff] %v368
        %433 = vst [vmem:[%s163 + $0x40] sm:$0xff] %v369
        %434 = vst [vmem:[%s163 + $0x48] sm:$0xff] %v370
        %435 = vst [vmem:[%s163 + $0x50] sm:$0xff] %v371
        %436 = vst [vmem:[%s163 + $0x58] sm:$0xff] %v372
        %437 = vst [vmem:[%s163 + $0x60] sm:$0xff] %v373
        %438 = vst [vmem:[%s163 + $0x68] sm:$0xff] %v374
        %439 = vst [vmem:[%s163 + $0x70] sm:$0xff] %v375
        %440 = vst [vmem:[%s163 + $0x78] sm:$0xff] %v376
        %441 = vst [vmem:[%s163 + $0x80] sm:$0xff] %v377
        %442 = vst [vmem:[%s163 + $0x88] sm:$0xff] %v378
        %443 = vst [vmem:[%s163 + $0x90] sm:$0xff] %v379
        %444 = vst [vmem:[%s163 + $0x98] sm:$0xff] %v380
        %445 = vst [vmem:[%s163 + $0xa0] sm:$0xff] %v381
        %446 = vst [vmem:[%s163 + $0xa8] sm:$0xff] %v382
        %447 = vst [vmem:[%s163 + $0xb0] sm:$0xff] %v383
        %448 = vst [vmem:[%s163 + $0xb8] sm:$0xff] %v384
        %449 = vst [vmem:[%s163 + $0xc0] sm:$0xff] %v385
        %450 = vst [vmem:[%s163 + $0xc8] sm:$0xff] %v386
        %451 = vst [vmem:[%s163 + $0xd0] sm:$0xff] %v387
        %452 = vst [vmem:[%s163 + $0xd8] sm:$0xff] %v388
        %453 = vst [vmem:[%s163 + $0xe0] sm:$0xff] %v389
        %454 = vst [vmem:[%s163 + $0xe8] sm:$0xff] %v390
        %455 = vst [vmem:[%s163 + $0xf0] sm:$0xff] %v391
        %456 = vst [vmem:[%s163 + $0xf8] sm:$0xff] %v392
        %457 = vst [vmem:[%s163 + $0x100] sm:$0xff] %v393
        %458 = vst [vmem:[%s163 + $0x108] sm:$0xff] %v394
        %459 = vst [vmem:[%s163 + $0x110] sm:$0xff] %v395
        %460 = vst [vmem:[%s163 + $0x118] sm:$0xff] %v396
        %461 = vst [vmem:[%s163 + $0x120] sm:$0xff] %v397
        %462 = vst [vmem:[%s163 + $0x128] sm:$0xff] %v398
        %463 = vst [vmem:[%s163 + $0x130] sm:$0xff] %v399
        %464 = vst [vmem:[%s163 + $0x138] sm:$0xff] %v400
        %465 = vst [vmem:[%s163 + $0x140] sm:$0xff] %v401
        %466 = vst [vmem:[%s163 + $0x148] sm:$0xff] %v402
        %467 = vst [vmem:[%s163 + $0x150] sm:$0xff] %v403
        %468 = vst [vmem:[%s163 + $0x158] sm:$0xff] %v404
        %469 = vst [vmem:[%s163 + $0x160] sm:$0xff] %v405
        %470 = vst [vmem:[%s163 + $0x168] sm:$0xff] %v406
        %471 = vst [vmem:[%s163 + $0x170] sm:$0xff] %v407
        %472 = vst [vmem:[%s163 + $0x178] sm:$0xff] %v408
        %473 = vst [vmem:[%s163 + $0x180] sm:$0xff] %v409
        %474 = vst [vmem:[%s163 + $0x188] sm:$0xff] %v410
        %475 = vst [vmem:[%s163 + $0x190] sm:$0xff] %v411
        %476 = vst [vmem:[%s163 + $0x198] sm:$0xff] %v412
        %477 = vst [vmem:[%s163 + $0x1a0] sm:$0xff] %v413
        %478 = vst [vmem:[%s163 + $0x1a8] sm:$0xff] %v414
        %479 = vst [vmem:[%s163 + $0x1b0] sm:$0xff] %v415
        %480 = vst [vmem:[%s163 + $0x1b8] sm:$0xff] %v416
        %481 = vst [vmem:[%s163 + $0x1c0] sm:$0xff] %v417
        %482 = vst [vmem:[%s163 + $0x1c8] sm:$0xff] %v418
        %483 = vst [vmem:[%s163 + $0x1d0] sm:$0xff] %v419
        %484 = vst [vmem:[%s163 + $0x1d8] sm:$0xff] %v420
        %485 = vst [vmem:[%s163 + $0x1e0] sm:$0xff] %v421
        %486 = vst [vmem:[%s163 + $0x1e8] sm:$0xff] %v422
        %487 = vst [vmem:[%s163 + $0x1f0] sm:$0xff] %v423
        %488 = vst [vmem:[%s163 + $0x1f8] sm:$0xff] %v424
        %s489 = sand.u32 %s75, 1
        %s490 = scalar_lea.sflag [#allocation5], %s489
        %s491 = sand.u32 %s75, 1
        %s492 = smul.addr %s491, 512
        %s493 = scalar_lea.vmem [#allocation6], %s492
        // Predicated region
        $region33: #{tpu_custom_call.1} parent=27 // pred_check
          %p494 = pneg %p85
        $region34: #{tpu_custom_call.1} parent=27 // pred_check_branch
          %496 = sbr.rel (%p494) target = $region36
        $region35: #{tpu_custom_call.1} parent=27 // pred_region
          %s497 = smul.u32 16, %s20
          %s499 = ssub.s32 8192, 8192
          %500 = vsyncadd %s490, %s499
          %s501 = smul.addr %s497, 4
          %s502 = smul.addr %s501, 128
          %s503 = scalar_lea.hbm %s2, %s502
          %s504 = sshll.u32 %s493, 4
          %s505 = int_to_ptr.vmem [resolvable:$true] %s504
          %510 = dma.vmem_to_hbm [thread:$0]  %s505, 8192, %s503, %s490, 512, 512, 32
        $region36: #{tpu_custom_call.1} parent=27 // pred_fallthru
          _
      $region28: #{tpu_custom_call.1} parent=5 // pred_fallthru
        _
      %p511 = scmp.le.s32.totalorder 2, %s15
      // Predicated region
      $region37: #{tpu_custom_call.1} parent=5 // pred_check
        %p512 = pneg %p511
      $region38: #{tpu_custom_call.1} parent=5 // pred_check_branch
        %514 = sbr.rel (%p512) target = $region40
      $region39: #{tpu_custom_call.1} parent=5 // pred_region
        %s515 = ssub.s32 %s15, 2
        // Predicated region
        $region41: #{tpu_custom_call.1} parent=39 // pred_check
          %p516 = pneg %p91
        $region42: #{tpu_custom_call.1} parent=39 // pred_check_branch
          %518 = sbr.rel (%p516) target = $region44
        $region43: #{tpu_custom_call.1} parent=39 // pred_region
          %s519 = sand.u32 %s76, 1
          %s520 = scalar_lea.sflag [#allocation5], %s519
          %s521 = sand.u32 %s76, 1
          %s522 = smul.addr %s521, 512
          %s523 = scalar_lea.vmem [#allocation6], %s522
          %524 = dma.done %s520, 8192
        $region44: #{tpu_custom_call.1} parent=39 // pred_fallthru
          _
      $region40: #{tpu_custom_call.1} parent=5 // pred_fallthru
        _
    $region6: #{tpu_custom_call.1} parent=1 // loop_footer
      %s19 = sadd.s32 1, %s15
    $region7: #{tpu_custom_call.1} parent=1 // loop_footer_branch
      %14 = sbr.rel target = $region3
    $region8: #{tpu_custom_call.1} parent=1 // loop_exit
      _
    %525 = vsyncpa [#allocation4], 1
    %s526 = scalar_lea.sflag [#allocation4], 1
    %527 = vsyncpa %s526, 1
    %528 = vsyncpa [#allocation5], 1
    %s529 = scalar_lea.sflag [#allocation5], 1
    %530 = vsyncpa %s529, 1

</llo_original>
